<compile_context>
chip_gen: v7x
topology: tpu7x:2x2x1
jax: 0.10.0
libtpu: 0.0.40
codegen_flags: <defaults>
</compile_context>

<pallas_src>
import functools

import jax
import jax.numpy as jnp
from jax import lax
from jax.experimental import pallas as pl
from jax.experimental.pallas import tpu as pltpu

LANE = 128  # TPU lane width


def _round_up(x, m):
    return ((x + m - 1) // m) * m


# ---------------------------------------------------------------------------
# One-time weight preprocessing: fuse, transpose, lane-pad, cast to bf16.
# ---------------------------------------------------------------------------
def prepare_fused_params(params, rep_dim, agru_dim):
    """Stack the six PyTorch Linear params into two bf16 weights + one f32 bias.

    Returns (w_fact, w_h, b_fused):
      w_fact: (r_pad, 3 * a_pad) bf16     (r_pad reserves one spare lane for g)
      w_h:    (a_pad, 3 * a_pad) bf16
      b_fused:(1,     3 * a_pad) f32
    Column blocks of z = fact_pad @ w_fact + h_pad @ w_h + b:
      z[:, 0:a_pad]         = Wr(fact) + Ur(h) + b_Ur   (r pre-activation)
      z[:, a_pad:2*a_pad]   = W(fact)
      z[:, 2*a_pad:3*a_pad] = U(h) + b_U
    """
    # +1 guarantees a spare lane column (index rep_dim) to carry the gate g.
    r_pad = _round_up(rep_dim + 1, LANE)
    a_pad = _round_up(agru_dim, LANE)

    w_fact = jnp.zeros((r_pad, 3 * a_pad), jnp.float32)
    w_fact = w_fact.at[:rep_dim, 0:agru_dim].set(params["Wr"].T)
    w_fact = w_fact.at[:rep_dim, a_pad:a_pad + agru_dim].set(params["W"].T)

    w_h = jnp.zeros((a_pad, 3 * a_pad), jnp.float32)
    w_h = w_h.at[:agru_dim, 0:agru_dim].set(params["Ur"].T)
    w_h = w_h.at[:agru_dim, 2 * a_pad:2 * a_pad + agru_dim].set(params["U"].T)

    b = jnp.zeros((1, 3 * a_pad), jnp.float32)
    b = b.at[0, 0:agru_dim].set(params["b_Ur"])
    b = b.at[0, 2 * a_pad:2 * a_pad + agru_dim].set(params["b_U"])

    return w_fact.astype(jnp.bfloat16), w_h.astype(jnp.bfloat16), b


# ---------------------------------------------------------------------------
# Shared in-kernel step math: two accumulated MXU dots (bf16 in, f32 acc).
# ---------------------------------------------------------------------------
def _agru_step(x_f32, h_f32, g, w_fact, w_h, bias):
    a_pad = h_f32.shape[1]
    z = jnp.dot(x_f32.astype(jnp.bfloat16), w_fact,
                preferred_element_type=jnp.float32)
    z = z + jnp.dot(h_f32.astype(jnp.bfloat16), w_h,
                    preferred_element_type=jnp.float32)
    z = z + bias
    r = jax.nn.sigmoid(z[:, :a_pad])
    h_t = jnp.tanh(z[:, a_pad:2 * a_pad] + r * z[:, 2 * a_pad:3 * a_pad])
    return h_f32 + g * (h_t - h_f32)          # == g*h_t + (1-g)*h


# ---------------------------------------------------------------------------
# Single-step kernel (matches the PyTorch module's forward signature).
# ---------------------------------------------------------------------------
def agru_cell_kernel(fact_ref, h_ref, g_ref, wf_ref, wh_ref, b_ref, out_ref):
    out_ref[...] = _agru_step(fact_ref[...], h_ref[...], g_ref[...],
                              wf_ref[...], wh_ref[...], b_ref[...])


def attention_gru_cell(fact, h_old, g_fact, fused):
    """One attention-GRU step. fact (B, rep_dim), h_old (B, agru_dim), g (B, 1).

    Prefer attention_gru_sequence for a recurrence: per-call dispatch dominates
    the sub-microsecond compute of a single step.
    """
    w_fact, w_h, b_fused = fused
    B, rep_dim = fact.shape
    agru_dim = h_old.shape[1]
    a_pad = b_fused.shape[1] // 3
    r_pad = w_fact.shape[0]

    fact_p = jnp.pad(fact, ((0, 0), (0, r_pad - rep_dim)))
    h_p = jnp.pad(h_old, ((0, 0), (0, a_pad - agru_dim)))

    vmem = pl.BlockSpec(memory_space=pltpu.MemorySpace.VMEM)
    out_p = pl.pallas_call(
        agru_cell_kernel,
        out_shape=jax.ShapeDtypeStruct((B, a_pad), jnp.float32),
        in_specs=[vmem] * 6,
        out_specs=vmem,
        # Reuse the padded h_old buffer for the output: no fresh HBM alloc/copy.
        input_output_aliases={1: 0},
    )(fact_p, h_p, g_fact, w_fact, w_h, b_fused)
    return out_p[:, :agru_dim]


# ---------------------------------------------------------------------------
# Whole recurrence in one pallas_call: grid=(batch_tiles, time_chunks),
# `time_chunk` AGRU steps per grid iteration, hidden state carried in VMEM.
# ---------------------------------------------------------------------------
def agru_seq_kernel(facts_ref, h0_ref, wf_ref, wh_ref, b_ref, out_ref, h_scr,
                    *, gate_col):
    c = pl.program_id(1)
    tc = facts_ref.shape[0]

    @pl.when(c == 0)
    def _():
        h_scr[...] = h0_ref[...]              # (re)initialize carry per batch tile

    def step(i, h):
        x = facts_ref[i]                      # (TB, r_pad) f32, one timestep
        g = x[:, gate_col:gate_col + 1]       # gate folded into spare lane column
        return _agru_step(x, h, g, wf_ref[...], wh_ref[...], b_ref[...])

    h_scr[...] = lax.fori_loop(0, tc, step, h_scr[...], unroll=True)

    @pl.when(c == pl.num_programs(1) - 1)
    def _():
        out_ref[...] = h_scr[...]             # write the final hidden state once


def attention_gru_sequence(facts, g_facts, h0, fused, *, time_chunk=8,
                           batch_tile=None):
    """Run T AGRU steps in one kernel.

    facts: (T, B, rep_dim)   g_facts: (T, B, 1)   h0: (B, agru_dim)
    Returns the final hidden state (B, agru_dim).
    """
    w_fact, w_h, b_fused = fused
    T, B, rep_dim = facts.shape
    agru_dim = h0.shape[1]
    a_pad = b_fused.shape[1] // 3
    r_pad = w_fact.shape[0]

    TB = B if batch_tile is None else batch_tile
    assert B % TB == 0 and (TB == B or TB % 8 == 0), "bad batch_tile"
    Tc = min(time_chunk, T)
    n_chunks = pl.cdiv(T, Tc)
    T_pad = n_chunks * Tc

    # Pad lanes + fold the gate into column `rep_dim`.  Zero-padded timesteps
    # (g = 0) are exact identity steps, so time padding is harmless.
    facts_p = jnp.zeros((T_pad, B, r_pad), jnp.float32)
    facts_p = facts_p.at[:T, :, :rep_dim].set(facts)
    facts_p = facts_p.at[:T, :, rep_dim].set(g_facts[..., 0])
    h0_p = jnp.pad(h0, ((0, 0), (0, a_pad - agru_dim)))

    kernel = functools.partial(agru_seq_kernel, gate_col=rep_dim)

    out_p = pl.pallas_call(
        kernel,
        out_shape=jax.ShapeDtypeStruct((B, a_pad), jnp.float32),
        grid_spec=pltpu.PrefetchScalarGridSpec(
            num_scalar_prefetch=0,
            grid=(B // TB, n_chunks),
            in_specs=[
                # Tc timesteps streamed per grid step, per batch tile.
                pl.BlockSpec((Tc, TB, r_pad), lambda b, c: (c, b, 0)),
                # h0 resident per batch tile.
                pl.BlockSpec((TB, a_pad), lambda b, c: (b, 0)),
                # Fused weights / bias resident across the whole grid.
                # TODO(synk): for very large agru_dim, stream the 3*a_pad output
                # dim in blocks instead of keeping it fully resident (v7x 64 MiB).
                pl.BlockSpec((r_pad, 3 * a_pad), lambda b, c: (0, 0)),
                pl.BlockSpec((a_pad, 3 * a_pad), lambda b, c: (0, 0)),
                pl.BlockSpec((1, 3 * a_pad), lambda b, c: (0, 0)),
            ],
            out_specs=pl.BlockSpec((TB, a_pad), lambda b, c: (b, 0)),
            scratch_shapes=[pltpu.VMEM((TB, a_pad), jnp.float32)],  # hidden carry
        ),
        compiler_params=pltpu.CompilerParams(
            # Batch tiles are independent (v7x megacore); time is recurrent.
            dimension_semantics=("parallel", "arbitrary"),
            vmem_limit_bytes=32 * 1024 * 1024),
    )(facts_p, h0_p, w_fact, w_h, b_fused)
    return out_p[:, :agru_dim]


# ---------------------------------------------------------------------------
# Pure-JAX references (match the PyTorch forward exactly, f32 throughout).
# ---------------------------------------------------------------------------
def attention_gru_cell_ref(fact, h_old, g_fact, params):
    r = jax.nn.sigmoid(fact @ params["Wr"].T + h_old @ params["Ur"].T + params["b_Ur"])
    h_t = jnp.tanh(fact @ params["W"].T + r * (h_old @ params["U"].T + params["b_U"]))
    g = jnp.broadcast_to(g_fact, h_t.shape)
    return g * h_t + (1.0 - g) * h_old


def attention_gru_sequence_ref(facts, g_facts, h0, params):
    h = h0
    for t in range(facts.shape[0]):
        h = attention_gru_cell_ref(facts[t], h, g_facts[t], params)
    return h


if __name__ == "__main__":
    B, rep_dim, agru_dim, T = 8, 64, 32, 6

    key = jax.random.PRNGKey(0)
    keys = jax.random.split(key, 12)

    # PyTorch Linear weight shapes: (out_features, in_features).
    params = {
        "Wr":   0.1 * jax.random.normal(keys[0], (agru_dim, rep_dim), jnp.float32),
        "Ur":   0.1 * jax.random.normal(keys[1], (agru_dim, agru_dim), jnp.float32),
        "b_Ur": 0.1 * jax.random.normal(keys[2], (agru_dim,), jnp.float32),
        "W":    0.1 * jax.random.normal(keys[3], (agru_dim, rep_dim), jnp.float32),
        "U":    0.1 * jax.random.normal(keys[4], (agru_dim, agru_dim), jnp.float32),
        "b_U":  0.1 * jax.random.normal(keys[5], (agru_dim,), jnp.float32),
    }

    # One-time fusion / transpose / lane-padding / bf16 cast of the weights.
    fused = prepare_fused_params(params, rep_dim, agru_dim)

    # Tolerances are loosened vs. the f32 reference because the matmul operands
    # are bf16 (f32 accumulation); GRU gating is insensitive at this level.
    ATOL = RTOL = 5e-2

    # --- single step (the module's forward) ---
    fact = jax.random.normal(keys[6], (B, rep_dim), jnp.float32)
    h_old = jax.random.normal(keys[7], (B, agru_dim), jnp.float32)
    g_fact = jax.nn.sigmoid(jax.random.normal(keys[8], (B, 1), jnp.float32))

    out = attention_gru_cell(fact, h_old, g_fact, fused)
    out = jax.block_until_ready(out)
    ref = attention_gru_cell_ref(fact, h_old, g_fact, params)
    assert out.shape == (B, agru_dim)
    assert jnp.allclose(out, ref, atol=ATOL, rtol=RTOL), \
        f"cell mismatch: {jnp.max(jnp.abs(out - ref))}"

    # --- full recurrence in one pallas_call (chunked over time) ---
    facts = jax.random.normal(keys[9], (T, B, rep_dim), jnp.float32)
    g_facts = jax.nn.sigmoid(jax.random.normal(keys[10], (T, B, 1), jnp.float32))
    h0 = jax.random.normal(keys[11], (B, agru_dim), jnp.float32)

    h_final = attention_gru_sequence(facts, g_facts, h0, fused, time_chunk=8)
    h_final = jax.block_until_ready(h_final)
    h_ref = attention_gru_sequence_ref(facts, g_facts, h0, params)
    assert h_final.shape == (B, agru_dim)
    assert jnp.allclose(h_final, h_ref, atol=ATOL, rtol=RTOL), \
        f"sequence mismatch: {jnp.max(jnp.abs(h_final - h_ref))}"

    print("KERNEL_OK")
</pallas_src>

<mosaic_0001>
module attributes {stable_mosaic.version = 11 : i64} {
  func.func @agru_cell_kernel(%arg0: memref<8x128xf32, #tpu.memory_space<vmem>>, %arg1: memref<8x128xf32, #tpu.memory_space<vmem>>, %arg2: memref<8x1xf32, #tpu.memory_space<vmem>>, %arg3: memref<128x384xbf16, #tpu.memory_space<vmem>>, %arg4: memref<128x384xbf16, #tpu.memory_space<vmem>>, %arg5: memref<1x384xf32, #tpu.memory_space<vmem>>, %arg6: memref<8x128xf32, #tpu.memory_space<vmem>>) attributes {dimension_semantics = [], scalar_prefetch = 0 : i64, scratch_operands = 0 : i64, tpu.core_type = #tpu.core_type<tc>} {
    %c0 = arith.constant 0 : index
    %c0_0 = arith.constant 0 : index
    %0 = vector.load %arg0[%c0, %c0_0] : memref<8x128xf32, #tpu.memory_space<vmem>>, vector<8x128xf32>
    %c0_1 = arith.constant 0 : index
    %c0_2 = arith.constant 0 : index
    %1 = vector.load %arg1[%c0_1, %c0_2] : memref<8x128xf32, #tpu.memory_space<vmem>>, vector<8x128xf32>
    %c0_3 = arith.constant 0 : index
    %c0_4 = arith.constant 0 : index
    %2 = vector.load %arg2[%c0_3, %c0_4] : memref<8x1xf32, #tpu.memory_space<vmem>>, vector<8x1xf32>
    %c0_5 = arith.constant 0 : index
    %c0_6 = arith.constant 0 : index
    %3 = vector.load %arg3[%c0_5, %c0_6] : memref<128x384xbf16, #tpu.memory_space<vmem>>, vector<128x384xbf16>
    %c0_7 = arith.constant 0 : index
    %c0_8 = arith.constant 0 : index
    %4 = vector.load %arg4[%c0_7, %c0_8] : memref<128x384xbf16, #tpu.memory_space<vmem>>, vector<128x384xbf16>
    %c0_9 = arith.constant 0 : index
    %c0_10 = arith.constant 0 : index
    %5 = vector.load %arg5[%c0_9, %c0_10] : memref<1x384xf32, #tpu.memory_space<vmem>>, vector<1x384xf32>
    %6 = arith.truncf %0 : vector<8x128xf32> to vector<8x128xbf16>
    %cst = arith.constant dense<0.000000e+00> : vector<8x384xf32>
    %7 = tpu.matmul %6, %3, %cst {dimension_numbers = #tpu.dot_dimension_numbers<[1], [0], [0], [1], [0, 0, 1, 1], [], []>} : vector<8x128xbf16>, vector<128x384xbf16>, vector<8x384xf32> -> vector<8x384xf32>
    %8 = arith.truncf %1 : vector<8x128xf32> to vector<8x128xbf16>
    %cst_11 = arith.constant dense<0.000000e+00> : vector<8x384xf32>
    %9 = tpu.matmul %8, %4, %cst_11 {dimension_numbers = #tpu.dot_dimension_numbers<[1], [0], [0], [1], [0, 0, 1, 1], [], []>} : vector<8x128xbf16>, vector<128x384xbf16>, vector<8x384xf32> -> vector<8x384xf32>
    %10 = arith.addf %7, %9 : vector<8x384xf32>
    %11 = vector.broadcast %5 : vector<1x384xf32> to vector<8x384xf32>
    %12 = arith.addf %10, %11 : vector<8x384xf32>
    %13 = vector.extract_strided_slice %12 {offsets = [0, 0], sizes = [8, 128], strides = [1, 1]} : vector<8x384xf32> to vector<8x128xf32>
    %14 = arith.negf %13 : vector<8x128xf32>
    %15 = math.exp %14 : vector<8x128xf32>
    %cst_12 = arith.constant 1.000000e+00 : f32
    %16 = vector.broadcast %cst_12 : f32 to vector<8x128xf32>
    %17 = arith.addf %16, %15 : vector<8x128xf32>
    %18 = arith.divf %16, %17 : vector<8x128xf32>
    %19 = vector.extract_strided_slice %12 {offsets = [0, 128], sizes = [8, 128], strides = [1, 1]} : vector<8x384xf32> to vector<8x128xf32>
    %20 = vector.extract_strided_slice %12 {offsets = [0, 256], sizes = [8, 128], strides = [1, 1]} : vector<8x384xf32> to vector<8x128xf32>
    %21 = arith.mulf %18, %20 : vector<8x128xf32>
    %22 = arith.addf %19, %21 : vector<8x128xf32>
    %23 = math.tanh %22 : vector<8x128xf32>
    %24 = arith.subf %23, %1 : vector<8x128xf32>
    %25 = vector.broadcast %2 : vector<8x1xf32> to vector<8x128xf32>
    %26 = arith.mulf %25, %24 : vector<8x128xf32>
    %27 = arith.addf %1, %26 : vector<8x128xf32>
    %c0_13 = arith.constant 0 : index
    %c0_14 = arith.constant 0 : index
    %28 = vector.load %arg6[%c0_13, %c0_14] : memref<8x128xf32, #tpu.memory_space<vmem>>, vector<8x128xf32>
    tpu.vector_store %arg6[%c0_13, %c0_14], %27 {strides = array<i32>} : memref<8x128xf32, #tpu.memory_space<vmem>>, vector<8x128xf32>,
    return
  }
}

</mosaic_0001>

<llo_original>
// kernel: tpu_custom_call.1
$region0: #{tpu_custom_call.1}
  #allocation0 [shape = 'u32[]', space=smem, size = 0x4, offset = 0x4, fixed_abs, tag = 'smem constant byte address 0x4 - core index']
  #allocation1 [shape = 'u32[144,128]{1,0:T(1,128)}', space=vmem, size = 0x12000, scoped, tag = 'internal scratch']
  %s0 = inlined_call_operand.vmem [shape: f32[8,128], index: 0, kind: input, shape index: {}]
  %s1 = inlined_call_operand.hbm [shape: f32[8,128], index: 1, kind: input, shape index: {}, may-alias: {1,6}]
  %s2 = inlined_call_operand.vmem [shape: f32[8,1], index: 2, kind: input, shape index: {}]
  %s3 = inlined_call_operand.hbm [shape: bf16[128,384], index: 3, kind: input, shape index: {}]
  %s4 = inlined_call_operand.hbm [shape: bf16[128,384], index: 4, kind: input, shape index: {}]
  %s5 = inlined_call_operand.vmem [shape: f32[1,384], index: 5, kind: input, shape index: {}]
  %s6 = inlined_call_operand.hbm [shape: f32[8,128], index: 6, kind: output, shape index: {}, may-alias: {1,6}]
  %s7 = sld [smem:[#allocation0]]
  $region46: #{tpu_custom_call.1} parent=0
    _
  %s9 = ssub.s32 1, %s7
  %s10 = scalar_select 0, %s9, %s7
  $region1: #{tpu_custom_call.1} parent=0
    #allocation2 [shape = 'u8[4096]{0}', space=vmem, size = 0x1000, scoped, tag = 'input window, operand 1, single buffered']
    #allocation3 [shape = 's32[1]{0}', space=sflag, size = 0x4, scoped, tag = 'scoped memory for tpu_custom_call.1']
    #allocation4 [shape = 's32[1]{0}', space=sflag, size = 0x4, scoped, tag = 'scoped memory for tpu_custom_call.1']
    #allocation5 [shape = 'u8[98304]{0}', space=vmem, size = 0x18000, scoped, tag = 'input window, operand 3, single buffered']
    #allocation6 [shape = 's32[1]{0}', space=sflag, size = 0x4, scoped, tag = 'scoped memory for tpu_custom_call.1']
    #allocation7 [shape = 'u8[98304]{0}', space=vmem, size = 0x18000, scoped, tag = 'input window, operand 4, single buffered']
    #allocation8 [shape = 'u8[4096]{0}', space=vmem, size = 0x1000, scoped, tag = 'output window, operand 0, single buffered']
    %11 = vsyncpa [#allocation3], 0
    %12 = vsyncpa [#allocation6], 0
    %13 = vsyncpa [#allocation4], 0
    // Predicated region
    $region2: #{tpu_custom_call.1} parent=1 // pred_check
      _
    $region3: #{tpu_custom_call.1} parent=1 // pred_check_branch
      %15 = sbr.rel (0) target = $region5
    $region4: #{tpu_custom_call.1} parent=1 // pred_region
      _
    $region5: #{tpu_custom_call.1} parent=1 // pred_fallthru
      _
    // Predicated region
    $region6: #{tpu_custom_call.1} parent=1 // pred_check
      _
    $region7: #{tpu_custom_call.1} parent=1 // pred_check_branch
      %17 = sbr.rel (0) target = $region9
    $region8: #{tpu_custom_call.1} parent=1 // pred_region
      %s19 = ssub.s32 128, 128
      %20 = vsyncadd [#allocation3], %s19
      %s22 = sshll.u32 [#allocation2], 4
      %s23 = int_to_ptr.vmem [resolvable:$true] %s22
      %25 = dma.hbm_to_vmem [thread:$0]  %s1, 128, %s23, [#allocation3]
    $region9: #{tpu_custom_call.1} parent=1 // pred_fallthru
      _
    // Predicated region
    $region10: #{tpu_custom_call.1} parent=1 // pred_check
      _
    $region11: #{tpu_custom_call.1} parent=1 // pred_check_branch
      %27 = sbr.rel (0) target = $region13
    $region12: #{tpu_custom_call.1} parent=1 // pred_region
      _
    $region13: #{tpu_custom_call.1} parent=1 // pred_fallthru
      _
    // Predicated region
    $region14: #{tpu_custom_call.1} parent=1 // pred_check
      _
    $region15: #{tpu_custom_call.1} parent=1 // pred_check_branch
      %29 = sbr.rel (0) target = $region17
    $region16: #{tpu_custom_call.1} parent=1 // pred_region
      %s31 = ssub.s32 3072, 3072
      %32 = vsyncadd [#allocation6], %s31
      %s33 = sshll.u32 [#allocation5], 4
      %s34 = int_to_ptr.vmem [resolvable:$true] %s33
      %39 = dma.hbm_to_vmem [thread:$0]  %s3, 3072, %s34, [#allocation6], 192, 192, 12
    $region17: #{tpu_custom_call.1} parent=1 // pred_fallthru
      _
    // Predicated region
    $region18: #{tpu_custom_call.1} parent=1 // pred_check
      _
    $region19: #{tpu_custom_call.1} parent=1 // pred_check_branch
      %41 = sbr.rel (0) target = $region21
    $region20: #{tpu_custom_call.1} parent=1 // pred_region
      %s43 = ssub.s32 3072, 3072
      %44 = vsyncadd [#allocation6], %s43
      %s45 = sshll.u32 [#allocation7], 4
      %s46 = int_to_ptr.vmem [resolvable:$true] %s45
      %51 = dma.hbm_to_vmem [thread:$0]  %s4, 3072, %s46, [#allocation6], 192, 192, 12
    $region21: #{tpu_custom_call.1} parent=1 // pred_fallthru
      _
    // Predicated region
    $region22: #{tpu_custom_call.1} parent=1 // pred_check
      _
    $region23: #{tpu_custom_call.1} parent=1 // pred_check_branch
      %53 = sbr.rel (0) target = $region25
    $region24: #{tpu_custom_call.1} parent=1 // pred_region
      _
    $region25: #{tpu_custom_call.1} parent=1 // pred_fallthru
      _
    // Predicated region
    $region26: #{tpu_custom_call.1} parent=1 // pred_check
      _
    $region27: #{tpu_custom_call.1} parent=1 // pred_check_branch
      %55 = sbr.rel (0) target = $region29
    $region28: #{tpu_custom_call.1} parent=1 // pred_region
      %56 = dma.done [#allocation3], 128
    $region29: #{tpu_custom_call.1} parent=1 // pred_fallthru
      _
    // Predicated region
    $region30: #{tpu_custom_call.1} parent=1 // pred_check
      _
    $region31: #{tpu_custom_call.1} parent=1 // pred_check_branch
      %58 = sbr.rel (0) target = $region33
    $region32: #{tpu_custom_call.1} parent=1 // pred_region
      %59 = dma.done [#allocation6], 3072
    $region33: #{tpu_custom_call.1} parent=1 // pred_fallthru
      _
    // Predicated region
    $region34: #{tpu_custom_call.1} parent=1 // pred_check
      _
    $region35: #{tpu_custom_call.1} parent=1 // pred_check_branch
      %61 = sbr.rel (0) target = $region37
    $region36: #{tpu_custom_call.1} parent=1 // pred_region
      %62 = dma.done [#allocation6], 3072
    $region37: #{tpu_custom_call.1} parent=1 // pred_fallthru
      _
    %v64 = vld [vmem:[%s0] sm:$0xff]
    %v65 = vld [vmem:[#allocation2] sm:$0xff]
    %v66 = vld [vmem:[%s2] sm:$0xff]
    %v67 = vld [vmem:[#allocation5] sm:$0xff]
    %v68 = vld [vmem:[#allocation5 + $0x8] sm:$0xf]
    %v69 = vld [vmem:[#allocation5 + $0xc] sm:$0xff]
    %v70 = vld [vmem:[#allocation5 + $0x14] sm:$0xf]
    %v71 = vld [vmem:[#allocation5 + $0x18] sm:$0xff]
    %v72 = vld [vmem:[#allocation5 + $0x20] sm:$0xf]
    %v73 = vld [vmem:[#allocation5 + $0x24] sm:$0xff]
    %v74 = vld [vmem:[#allocation5 + $0x2c] sm:$0xf]
    %v75 = vld [vmem:[#allocation5 + $0x30] sm:$0xff]
    %v76 = vld [vmem:[#allocation5 + $0x38] sm:$0xf]
    %v77 = vld [vmem:[#allocation5 + $0x3c] sm:$0xff]
    %v78 = vld [vmem:[#allocation5 + $0x44] sm:$0xf]
    %v79 = vld [vmem:[#allocation5 + $0x48] sm:$0xff]
    %v80 = vld [vmem:[#allocation5 + $0x50] sm:$0xf]
    %v81 = vld [vmem:[#allocation5 + $0x54] sm:$0xff]
    %v82 = vld [vmem:[#allocation5 + $0x5c] sm:$0xf]
    %v83 = vld [vmem:[#allocation5 + $0x60] sm:$0xff]
    %v84 = vld [vmem:[#allocation5 + $0x68] sm:$0xf]
    %v85 = vld [vmem:[#allocation5 + $0x6c] sm:$0xff]
    %v86 = vld [vmem:[#allocation5 + $0x74] sm:$0xf]
    %v87 = vld [vmem:[#allocation5 + $0x78] sm:$0xff]
    %v88 = vld [vmem:[#allocation5 + $0x80] sm:$0xf]
    %v89 = vld [vmem:[#allocation5 + $0x84] sm:$0xff]
    %v90 = vld [vmem:[#allocation5 + $0x8c] sm:$0xf]
    %v91 = vld [vmem:[#allocation5 + $0x90] sm:$0xff]
    %v92 = vld [vmem:[#allocation5 + $0x98] sm:$0xf]
    %v93 = vld [vmem:[#allocation5 + $0x9c] sm:$0xff]
    %v94 = vld [vmem:[#allocation5 + $0xa4] sm:$0xf]
    %v95 = vld [vmem:[#allocation5 + $0xa8] sm:$0xff]
    %v96 = vld [vmem:[#allocation5 + $0xb0] sm:$0xf]
    %v97 = vld [vmem:[#allocation5 + $0xb4] sm:$0xff]
    %v98 = vld [vmem:[#allocation5 + $0xbc] sm:$0xf]
    %v99 = vld [vmem:[#allocation7] sm:$0xff]
    %v100 = vld [vmem:[#allocation7 + $0x8] sm:$0xf]
    %v101 = vld [vmem:[#allocation7 + $0xc] sm:$0xff]
    %v102 = vld [vmem:[#allocation7 + $0x14] sm:$0xf]
    %v103 = vld [vmem:[#allocation7 + $0x18] sm:$0xff]
    %v104 = vld [vmem:[#allocation7 + $0x20] sm:$0xf]
    %v105 = vld [vmem:[#allocation7 + $0x24] sm:$0xff]
    %v106 = vld [vmem:[#allocation7 + $0x2c] sm:$0xf]
    %v107 = vld [vmem:[#allocation7 + $0x30] sm:$0xff]
    %v108 = vld [vmem:[#allocation7 + $0x38] sm:$0xf]
    %v109 = vld [vmem:[#allocation7 + $0x3c] sm:$0xff]
    %v110 = vld [vmem:[#allocation7 + $0x44] sm:$0xf]
    %v111 = vld [vmem:[#allocation7 + $0x48] sm:$0xff]
    %v112 = vld [vmem:[#allocation7 + $0x50] sm:$0xf]
    %v113 = vld [vmem:[#allocation7 + $0x54] sm:$0xff]
    %v114 = vld [vmem:[#allocation7 + $0x5c] sm:$0xf]
    %v115 = vld [vmem:[#allocation7 + $0x60] sm:$0xff]
    %v116 = vld [vmem:[#allocation7 + $0x68] sm:$0xf]
    %v117 = vld [vmem:[#allocation7 + $0x6c] sm:$0xff]
    %v118 = vld [vmem:[#allocation7 + $0x74] sm:$0xf]
    %v119 = vld [vmem:[#allocation7 + $0x78] sm:$0xff]
    %v120 = vld [vmem:[#allocation7 + $0x80] sm:$0xf]
    %v121 = vld [vmem:[#allocation7 + $0x84] sm:$0xff]
    %v122 = vld [vmem:[#allocation7 + $0x8c] sm:$0xf]
    %v123 = vld [vmem:[#allocation7 + $0x90] sm:$0xff]
    %v124 = vld [vmem:[#allocation7 + $0x98] sm:$0xf]
    %v125 = vld [vmem:[#allocation7 + $0x9c] sm:$0xff]
    %v126 = vld [vmem:[#allocation7 + $0xa4] sm:$0xf]
    %v127 = vld [vmem:[#allocation7 + $0xa8] sm:$0xff]
    %v128 = vld [vmem:[#allocation7 + $0xb0] sm:$0xf]
    %v129 = vld [vmem:[#allocation7 + $0xb4] sm:$0xff]
    %v130 = vld [vmem:[#allocation7 + $0xbc] sm:$0xf]
    %v131 = vld [vmem:[%s5] sm:$0x7]
    %v132 = vpack.c.bf16 %v64, %v64
    %v133 = vpack.c.bf16 %v65, %v65
    %v166 = vunpack.c.l.b16 %v99
    %v167 = vunpack.c.h.b16 %v99
    %v168 = vunpack.c.l.b16 %v100
    %v169 = vunpack.c.l.b16 %v101
    %v170 = vunpack.c.h.b16 %v101
    %v171 = vunpack.c.l.b16 %v102
    %v172 = vunpack.c.l.b16 %v103
    %v173 = vunpack.c.h.b16 %v103
    %v174 = vunpack.c.l.b16 %v104
    %v175 = vunpack.c.l.b16 %v105
    %v176 = vunpack.c.h.b16 %v105
    %v177 = vunpack.c.l.b16 %v106
    %v178 = vunpack.c.l.b16 %v107
    %v179 = vunpack.c.h.b16 %v107
    %v180 = vunpack.c.l.b16 %v108
    %v181 = vunpack.c.l.b16 %v109
    %v182 = vunpack.c.h.b16 %v109
    %v183 = vunpack.c.l.b16 %v110
    %v184 = vunpack.c.l.b16 %v111
    %v185 = vunpack.c.h.b16 %v111
    %v186 = vunpack.c.l.b16 %v112
    %v187 = vunpack.c.l.b16 %v113
    %v188 = vunpack.c.h.b16 %v113
    %v189 = vunpack.c.l.b16 %v114
    %v190 = vunpack.c.l.b16 %v115
    %v191 = vunpack.c.h.b16 %v115
    %v192 = vunpack.c.l.b16 %v116
    %v193 = vunpack.c.l.b16 %v117
    %v194 = vunpack.c.h.b16 %v117
    %v195 = vunpack.c.l.b16 %v118
    %v196 = vunpack.c.l.b16 %v119
    %v197 = vunpack.c.h.b16 %v119
    %v198 = vunpack.c.l.b16 %v120
    %v199 = vunpack.c.l.b16 %v121
    %v200 = vunpack.c.h.b16 %v121
    %v201 = vunpack.c.l.b16 %v122
    %v202 = vunpack.c.l.b16 %v123
    %v203 = vunpack.c.h.b16 %v123
    %v204 = vunpack.c.l.b16 %v124
    %v205 = vunpack.c.l.b16 %v125
    %v206 = vunpack.c.h.b16 %v125
    %v207 = vunpack.c.l.b16 %v126
    %v208 = vunpack.c.l.b16 %v127
    %v209 = vunpack.c.h.b16 %v127
    %v210 = vunpack.c.l.b16 %v128
    %v211 = vunpack.c.l.b16 %v129
    %v212 = vunpack.c.h.b16 %v129
    %v213 = vunpack.c.l.b16 %v130
    %v214 = vpack.c.b16 %v169, %v166
    %v215 = vpack.c.b16 %v170, %v167
    %v216 = vpack.c.b16 %v171, %v168
    %v217 = vpack.c.b16 %v175, %v172
    %v218 = vpack.c.b16 %v176, %v173
    %v219 = vpack.c.b16 %v177, %v174
    %v220 = vpack.c.b16 %v181, %v178
    %v221 = vpack.c.b16 %v182, %v179
    %v222 = vpack.c.b16 %v183, %v180
    %v223 = vpack.c.b16 %v187, %v184
    %v224 = vpack.c.b16 %v188, %v185
    %v225 = vpack.c.b16 %v189, %v186
    %v226 = vpack.c.b16 %v193, %v190
    %v227 = vpack.c.b16 %v194, %v191
    %v228 = vpack.c.b16 %v195, %v192
    %v229 = vpack.c.b16 %v199, %v196
    %v230 = vpack.c.b16 %v200, %v197
    %v231 = vpack.c.b16 %v201, %v198
    %v232 = vpack.c.b16 %v205, %v202
    %v233 = vpack.c.b16 %v206, %v203
    %v234 = vpack.c.b16 %v207, %v204
    %v235 = vpack.c.b16 %v211, %v208
    %v236 = vpack.c.b16 %v212, %v209
    %v237 = vpack.c.b16 %v213, %v210
    %262 = vmatprep.subr.bf16.mxu0 %v215
    %263 = vmatpush1.bf16.msra.mxu0 %v214
    %264 = vmatprep.subr.bf16.mxu0 %v218
    %265 = vmatpush1.bf16.msra.mxu0 %v217
    %266 = vmatprep.subr.bf16.mxu0 %v221
    %267 = vmatpush1.bf16.msra.mxu0 %v220
    %268 = vmatprep.subr.bf16.mxu0 %v224
    %269 = vmatpush1.bf16.msra.mxu0 %v223
    %270 = vmatprep.subr.bf16.mxu0 %v227
    %271 = vmatpush1.bf16.msra.mxu0 %v226
    %272 = vmatprep.subr.bf16.mxu0 %v230
    %273 = vmatpush1.bf16.msra.mxu0 %v229
    %274 = vmatprep.subr.bf16.mxu0 %v233
    %275 = vmatpush1.bf16.msra.mxu0 %v232
    %276 = vmatprep.subr.bf16.mxu0 %v236
    %277 = vmatpush1.bf16.msra.mxu0 %v235
    %278 = vmatprep.subr.bf16.mxu0 0
    %279 = vmatpush1.bf16.msra.mxu0 0
    %280 = vmatprep.subr.bf16.mxu0 0
    %281 = vmatpush1.bf16.msra.mxu0 0
    %282 = vmatprep.subr.bf16.mxu0 0
    %283 = vmatpush1.bf16.msra.mxu0 0
    %284 = vmatprep.subr.bf16.mxu0 0
    %285 = vmatpush1.bf16.msra.mxu0 0
    %286 = vmatprep.subr.bf16.mxu0 0
    %287 = vmatpush1.bf16.msra.mxu0 0
    %288 = vmatprep.subr.bf16.mxu0 0
    %289 = vmatpush1.bf16.msra.mxu0 0
    %290 = vmatprep.subr.bf16.mxu0 0
    %291 = vmatpush1.bf16.msra.mxu0 0
    %292 = vmatprep.subr.bf16.mxu0 0
    %293 = vmatpush1.bf16.msra.mxu0 0
    %294 = vmatprep.mubr.bf16.mxu0 0
    %295 = vmatmul.mubr.bf16.gmra.mrb[0].mxu0 %v133
    %v296 = vpop.f32.mrb[0].mxu0
    %v297 = vadd.f32 0.0, %v296
    %v298 = vpop.f32.mrb[0].mxu0
    %v299 = vadd.f32 0.0, %v298
    %v300 = vpop.f32.mrb[0].mxu0
    %v301 = vpop.f32.mrb[0].mxu0
    %302 = vdwg.mxu0
    %303 = vmatprep.subr.bf16.mxu0 0
    %304 = vmatpush1.bf16.msra.mxu0 %v216
    %305 = vmatprep.subr.bf16.mxu0 0
    %306 = vmatpush1.bf16.msra.mxu0 %v219
    %307 = vmatprep.subr.bf16.mxu0 0
    %308 = vmatpush1.bf16.msra.mxu0 %v222
    %309 = vmatprep.subr.bf16.mxu0 0
    %310 = vmatpush1.bf16.msra.mxu0 %v225
    %311 = vmatprep.subr.bf16.mxu0 0
    %312 = vmatpush1.bf16.msra.mxu0 %v228
    %313 = vmatprep.subr.bf16.mxu0 0
    %314 = vmatpush1.bf16.msra.mxu0 %v231
    %315 = vmatprep.subr.bf16.mxu0 0
    %316 = vmatpush1.bf16.msra.mxu0 %v234
    %317 = vmatprep.subr.bf16.mxu0 0
    %318 = vmatpush1.bf16.msra.mxu0 %v237
    %319 = vmatprep.subr.bf16.mxu0 0
    %320 = vmatpush1.bf16.msra.mxu0 0
    %321 = vmatprep.subr.bf16.mxu0 0
    %322 = vmatpush1.bf16.msra.mxu0 0
    %323 = vmatprep.subr.bf16.mxu0 0
    %324 = vmatpush1.bf16.msra.mxu0 0
    %325 = vmatprep.subr.bf16.mxu0 0
    %326 = vmatpush1.bf16.msra.mxu0 0
    %327 = vmatprep.subr.bf16.mxu0 0
    %328 = vmatpush1.bf16.msra.mxu0 0
    %329 = vmatprep.subr.bf16.mxu0 0
    %330 = vmatpush1.bf16.msra.mxu0 0
    %331 = vmatprep.subr.bf16.mxu0 0
    %332 = vmatpush1.bf16.msra.mxu0 0
    %333 = vmatprep.subr.bf16.mxu0 0
    %334 = vmatpush1.bf16.msra.mxu0 0
    %335 = vmatprep.mubr.bf16.mxu0 0
    %336 = vmatmul.mubr.bf16.gmra.mrb[0].mxu0 %v133
    %v337 = vpop.f32.mrb[0].mxu0
    %v338 = vadd.f32 0.0, %v337
    %v339 = vpop.f32.mrb[0].mxu0
    %v340 = vpop.f32.mrb[0].mxu0
    %v341 = vpop.f32.mrb[0].mxu0
    %342 = vdwg.mxu0
    %v375 = vunpack.c.l.b16 %v67
    %v376 = vunpack.c.h.b16 %v67
    %v377 = vunpack.c.l.b16 %v68
    %v378 = vunpack.c.l.b16 %v69
    %v379 = vunpack.c.h.b16 %v69
    %v380 = vunpack.c.l.b16 %v70
    %v381 = vunpack.c.l.b16 %v71
    %v382 = vunpack.c.h.b16 %v71
    %v383 = vunpack.c.l.b16 %v72
    %v384 = vunpack.c.l.b16 %v73
    %v385 = vunpack.c.h.b16 %v73
    %v386 = vunpack.c.l.b16 %v74
    %v387 = vunpack.c.l.b16 %v75
    %v388 = vunpack.c.h.b16 %v75
    %v389 = vunpack.c.l.b16 %v76
    %v390 = vunpack.c.l.b16 %v77
    %v391 = vunpack.c.h.b16 %v77
    %v392 = vunpack.c.l.b16 %v78
    %v393 = vunpack.c.l.b16 %v79
    %v394 = vunpack.c.h.b16 %v79
    %v395 = vunpack.c.l.b16 %v80
    %v396 = vunpack.c.l.b16 %v81
    %v397 = vunpack.c.h.b16 %v81
    %v398 = vunpack.c.l.b16 %v82
    %v399 = vunpack.c.l.b16 %v83
    %v400 = vunpack.c.h.b16 %v83
    %v401 = vunpack.c.l.b16 %v84
    %v402 = vunpack.c.l.b16 %v85
    %v403 = vunpack.c.h.b16 %v85
    %v404 = vunpack.c.l.b16 %v86
    %v405 = vunpack.c.l.b16 %v87
    %v406 = vunpack.c.h.b16 %v87
    %v407 = vunpack.c.l.b16 %v88
    %v408 = vunpack.c.l.b16 %v89
    %v409 = vunpack.c.h.b16 %v89
    %v410 = vunpack.c.l.b16 %v90
    %v411 = vunpack.c.l.b16 %v91
    %v412 = vunpack.c.h.b16 %v91
    %v413 = vunpack.c.l.b16 %v92
    %v414 = vunpack.c.l.b16 %v93
    %v415 = vunpack.c.h.b16 %v93
    %v416 = vunpack.c.l.b16 %v94
    %v417 = vunpack.c.l.b16 %v95
    %v418 = vunpack.c.h.b16 %v95
    %v419 = vunpack.c.l.b16 %v96
    %v420 = vunpack.c.l.b16 %v97
    %v421 = vunpack.c.h.b16 %v97
    %v422 = vunpack.c.l.b16 %v98
    %v423 = vpack.c.b16 %v378, %v375
    %v424 = vpack.c.b16 %v379, %v376
    %v425 = vpack.c.b16 %v380, %v377
    %v426 = vpack.c.b16 %v384, %v381
    %v427 = vpack.c.b16 %v385, %v382
    %v428 = vpack.c.b16 %v386, %v383
    %v429 = vpack.c.b16 %v390, %v387
    %v430 = vpack.c.b16 %v391, %v388
    %v431 = vpack.c.b16 %v392, %v389
    %v432 = vpack.c.b16 %v396, %v393
    %v433 = vpack.c.b16 %v397, %v394
    %v434 = vpack.c.b16 %v398, %v395
    %v435 = vpack.c.b16 %v402, %v399
    %v436 = vpack.c.b16 %v403, %v400
    %v437 = vpack.c.b16 %v404, %v401
    %v438 = vpack.c.b16 %v408, %v405
    %v439 = vpack.c.b16 %v409, %v406
    %v440 = vpack.c.b16 %v410, %v407
    %v441 = vpack.c.b16 %v414, %v411
    %v442 = vpack.c.b16 %v415, %v412
    %v443 = vpack.c.b16 %v416, %v413
    %v444 = vpack.c.b16 %v420, %v417
    %v445 = vpack.c.b16 %v421, %v418
    %v446 = vpack.c.b16 %v422, %v419
    %471 = vmatprep.subr.bf16.mxu0 %v424
    %472 = vmatpush1.bf16.msra.mxu0 %v423
    %473 = vmatprep.subr.bf16.mxu0 %v427
    %474 = vmatpush1.bf16.msra.mxu0 %v426
    %475 = vmatprep.subr.bf16.mxu0 %v430
    %476 = vmatpush1.bf16.msra.mxu0 %v429
    %477 = vmatprep.subr.bf16.mxu0 %v433
    %478 = vmatpush1.bf16.msra.mxu0 %v432
    %479 = vmatprep.subr.bf16.mxu0 %v436
    %480 = vmatpush1.bf16.msra.mxu0 %v435
    %481 = vmatprep.subr.bf16.mxu0 %v439
    %482 = vmatpush1.bf16.msra.mxu0 %v438
    %483 = vmatprep.subr.bf16.mxu0 %v442
    %484 = vmatpush1.bf16.msra.mxu0 %v441
    %485 = vmatprep.subr.bf16.mxu0 %v445
    %486 = vmatpush1.bf16.msra.mxu0 %v444
    %487 = vmatprep.subr.bf16.mxu0 0
    %488 = vmatpush1.bf16.msra.mxu0 0
    %489 = vmatprep.subr.bf16.mxu0 0
    %490 = vmatpush1.bf16.msra.mxu0 0
    %491 = vmatprep.subr.bf16.mxu0 0
    %492 = vmatpush1.bf16.msra.mxu0 0
    %493 = vmatprep.subr.bf16.mxu0 0
    %494 = vmatpush1.bf16.msra.mxu0 0
    %495 = vmatprep.subr.bf16.mxu0 0
    %496 = vmatpush1.bf16.msra.mxu0 0
    %497 = vmatprep.subr.bf16.mxu0 0
    %498 = vmatpush1.bf16.msra.mxu0 0
    %499 = vmatprep.subr.bf16.mxu0 0
    %500 = vmatpush1.bf16.msra.mxu0 0
    %501 = vmatprep.subr.bf16.mxu0 0
    %502 = vmatpush1.bf16.msra.mxu0 0
    %503 = vmatprep.mubr.bf16.mxu0 0
    %504 = vmatmul.mubr.bf16.gmra.mrb[0].mxu0 %v132
    %v505 = vpop.f32.mrb[0].mxu0
    %v506 = vadd.f32 %v297, %v505
    %v507 = vpop.f32.mrb[0].mxu0
    %v508 = vadd.f32 %v299, %v507
    %v509 = vpop.f32.mrb[0].mxu0
    %v510 = vpop.f32.mrb[0].mxu0
    %511 = vdwg.mxu0
    %512 = vmatprep.subr.bf16.mxu0 0
    %513 = vmatpush1.bf16.msra.mxu0 %v425
    %514 = vmatprep.subr.bf16.mxu0 0
    %515 = vmatpush1.bf16.msra.mxu0 %v428
    %516 = vmatprep.subr.bf16.mxu0 0
    %517 = vmatpush1.bf16.msra.mxu0 %v431
    %518 = vmatprep.subr.bf16.mxu0 0
    %519 = vmatpush1.bf16.msra.mxu0 %v434
    %520 = vmatprep.subr.bf16.mxu0 0
    %521 = vmatpush1.bf16.msra.mxu0 %v437
    %522 = vmatprep.subr.bf16.mxu0 0
    %523 = vmatpush1.bf16.msra.mxu0 %v440
    %524 = vmatprep.subr.bf16.mxu0 0
    %525 = vmatpush1.bf16.msra.mxu0 %v443
    %526 = vmatprep.subr.bf16.mxu0 0
    %527 = vmatpush1.bf16.msra.mxu0 %v446
    %528 = vmatprep.subr.bf16.mxu0 0
    %529 = vmatpush1.bf16.msra.mxu0 0
    %530 = vmatprep.subr.bf16.mxu0 0
    %531 = vmatpush1.bf16.msra.mxu0 0
    %532 = vmatprep.subr.bf16.mxu0 0
    %533 = vmatpush1.bf16.msra.mxu0 0
    %534 = vmatprep.subr.bf16.mxu0 0
    %535 = vmatpush1.bf16.msra.mxu0 0
    %536 = vmatprep.subr.bf16.mxu0 0
    %537 = vmatpush1.bf16.msra.mxu0 0
    %538 = vmatprep.subr.bf16.mxu0 0
    %539 = vmatpush1.bf16.msra.mxu0 0
    %540 = vmatprep.subr.bf16.mxu0 0
    %541 = vmatpush1.bf16.msra.mxu0 0
    %542 = vmatprep.subr.bf16.mxu0 0
    %543 = vmatpush1.bf16.msra.mxu0 0
    %544 = vmatprep.mubr.bf16.mxu0 0
    %545 = vmatmul.mubr.bf16.gmra.mrb[0].mxu0 %v132
    %v546 = vpop.f32.mrb[0].mxu0
    %v547 = vadd.f32 %v338, %v546
    %v548 = vpop.f32.mrb[0].mxu0
    %v549 = vpop.f32.mrb[0].mxu0
    %v550 = vpop.f32.mrb[0].mxu0
    %551 = vdwg.mxu0
    %v553 = vlaneseq
    %v554 = vshrl.u32 %v553, 7
    %v555 = vsub.s32 0, %v554
    %v556 = vrot.slane %v131, %v555
    %v557 = vlaneseq
    %v558 = vshrl.u32 %v557, 7
    %v559 = vsub.s32 1, %v558
    %v560 = vrot.slane %v131, %v559
    %v561 = vlaneseq
    %v562 = vshrl.u32 %v561, 7
    %v563 = vsub.s32 2, %v562
    %v564 = vrot.slane %v131, %v563
    %v568 = vadd.f32 %v506, %v556
    %v569 = vadd.f32 %v508, %v560
    %v570 = vadd.f32 %v547, %v564
    %v571 = vxor.u32 %v568, 2147483648
    %v572 = vmul.f32 %v571, 1.442695
    %v573 = vpow.pop %v572
    %v574 = vadd.f32 %v573, 1.0
    %v575 = vrcp.pop %v574
    %v576 = vmul.f32 1.0, %v575
    %v577 = vmul.f32 %v576, %v570
    %v578 = vadd.f32 %v569, %v577
    %v579 = vtanh.pop %v578
    %v580 = vsub.f32 %v579, %v65
    %582 = vset.pattern.permute.xlu0 0
    %583 = vperm.xlu0 %582, %v66
    %v584 = vpop.permute.xlu0 %583
    %v586 = vmul.f32 %v584, %v580
    %v587 = vadd.f32 %v65, %v586
    %588 = vst [vmem:[#allocation8] sm:$0xff] %v587
    // Predicated region
    $region38: #{tpu_custom_call.1} parent=1 // pred_check
      _
    $region39: #{tpu_custom_call.1} parent=1 // pred_check_branch
      %590 = sbr.rel (0) target = $region41
    $region40: #{tpu_custom_call.1} parent=1 // pred_region
      %s592 = ssub.s32 128, 128
      %593 = vsyncadd [#allocation4], %s592
      %s595 = sshll.u32 [#allocation8], 4
      %s596 = int_to_ptr.vmem [resolvable:$true] %s595
      %598 = dma.vmem_to_hbm [thread:$0]  %s596, 128, %s6, [#allocation4]
    $region41: #{tpu_custom_call.1} parent=1 // pred_fallthru
      _
    // Predicated region
    $region42: #{tpu_custom_call.1} parent=1 // pred_check
      _
    $region43: #{tpu_custom_call.1} parent=1 // pred_check_branch
      %600 = sbr.rel (0) target = $region45
    $region44: #{tpu_custom_call.1} parent=1 // pred_region
      %601 = dma.done [#allocation4], 128
    $region45: #{tpu_custom_call.1} parent=1 // pred_fallthru
      _
    %602 = vsyncpa [#allocation3], 1
    %603 = vsyncpa [#allocation6], 1
    %604 = vsyncpa [#allocation4], 1

</llo_original>
